<compile_context>
chip_gen: v7x
topology: tpu7x:2x2x1
jax: 0.10.0
libtpu: 0.0.40
codegen_flags: <defaults>
</compile_context>

<pallas_src>
import functools

import jax
import jax.numpy as jnp
from jax.experimental import pallas as pl
from jax.experimental.pallas import tpu as pltpu


# ----------------------------- Pallas kernel ------------------------------

def _qnet_kernel(x_ref, a_ref, w1x_ref, w1a_ref, b1_ref, w2_ref, b2_ref,
                 w3_ref, b3_ref, o_ref):
    # Layer 1 (split contraction): x @ W1[:S] + a @ W1[S:] + b1
    #   == cat([x, a], dim=1) @ W1 + b1.   f32, tiny K, no concat needed.
    h1 = jnp.dot(x_ref[...], w1x_ref[...], preferred_element_type=jnp.float32)
    h1 = h1 + jnp.dot(a_ref[...], w1a_ref[...],
                      preferred_element_type=jnp.float32)
    h1 = jnp.maximum(h1 + b1_ref[...], 0.0)                      # ReLU

    # Layer 2: bf16 operands on the MXU, f32 accumulation.
    h2 = jnp.dot(h1.astype(jnp.bfloat16), w2_ref[...],
                 preferred_element_type=jnp.float32) + b2_ref[...]
    h2 = jnp.maximum(h2, 0.0)                                    # ReLU

    # Output layer (out_features = 1), emitted lane-dense as a (1, tb) row:
    # contract the last dims of w3 (8, H2; row 0 holds the real weights, rest
    # zero for sublane alignment) against h2 (tb, H2) -> (8, tb); row 0 is q.
    q = jax.lax.dot_general(
        w3_ref[...], h2,
        dimension_numbers=(((1,), (1,)), ((), ())),
        preferred_element_type=jnp.float32)
    o_ref[...] = (q[0:1, :] + b3_ref[...]).reshape(1, 1, -1)


# ------------------------------ host wrapper -------------------------------

def _round_up(x, m):
    return ((x + m - 1) // m) * m


@functools.partial(jax.jit, static_argnames=("tb_max",))
def state_action_function_forward(x, a, prep, tb_max=2048):
    """Q(s, a) forward pass.

    x: (B, state_dim) f32, a: (B, action_dim) f32.
    prep: output of prepare_params().
    Returns (B, 1) f32.
    """
    B, S = x.shape
    A = a.shape[1]
    H1 = prep["w1x"].shape[1]
    H2 = prep["w2"].shape[1]

    # ---- static batch-tile selection --------------------------------------
    # Per-step pipeline overhead (~0.35 us) dwarfs per-step compute, so pick
    # the largest tile <= tb_max, but keep >= 2 grid steps once the batch
    # allows it so both v7x TensorCores get work (no-op on v5e / v6e).
    tb_max = max(8, (int(tb_max) // 8) * 8)      # always a multiple of 8
    B8 = _round_up(B, 8)
    if B8 <= 8:
        tb = B8
    else:
        half = _round_up(-(-B8 // 2), 8)         # ceil(B8 / 2), sublane-aligned
        tb = min(tb_max, half)
    Bp = _round_up(B, tb)
    nb = Bp // tb

    if Bp != B:
        x = jnp.pad(x, ((0, Bp - B), (0, 0)))
        a = jnp.pad(a, ((0, Bp - B), (0, 0)))

    out = pl.pallas_call(
        _qnet_kernel,
        out_shape=jax.ShapeDtypeStruct((nb, 1, tb), jnp.float32),
        grid=(nb,),
        in_specs=[
            # Activations: streamed (double-buffered) over the batch grid.
            pl.BlockSpec((tb, S), lambda i: (i, 0)),     # x   (f32)
            pl.BlockSpec((tb, A), lambda i: (i, 0)),     # a   (f32)
            # Weights / biases: constant block index -> resident in VMEM.
            pl.BlockSpec((S, H1), lambda i: (0, 0)),     # w1x (f32)
            pl.BlockSpec((A, H1), lambda i: (0, 0)),     # w1a (f32)
            pl.BlockSpec((1, H1), lambda i: (0, 0)),     # b1  (f32)
            pl.BlockSpec((H1, H2), lambda i: (0, 0)),    # w2  (bf16)
            pl.BlockSpec((1, H2), lambda i: (0, 0)),     # b2  (f32)
            pl.BlockSpec((8, H2), lambda i: (0, 0)),     # w3 rows (f32)
            pl.BlockSpec((1, 1), lambda i: (0, 0)),      # b3  (f32)
        ],
        # Lane-dense (1, tb) output row per grid step (unmasked wide stores).
        out_specs=pl.BlockSpec((1, 1, tb), lambda i: (i, 0, 0)),
        compiler_params=pltpu.CompilerParams(
            dimension_semantics=("parallel",),
            vmem_limit_bytes=32 * 1024 * 1024),
    )(x, a, prep["w1x"], prep["w1a"], prep["b1"], prep["w2"], prep["b2"],
      prep["w3_rows"], prep["b3"])

    return out.reshape(Bp, 1)[:B]


# ------------------------- deterministic parameters ------------------------

def xavier_uniform(key, fan_in, fan_out, gain=1.0):
    # Matches torch.nn.init.xavier_uniform_ on a (fan_out, fan_in) weight;
    # we store the transpose (fan_in, fan_out) so the kernel does h @ W.
    bound = gain * jnp.sqrt(6.0 / (fan_in + fan_out))
    return jax.random.uniform(key, (fan_in, fan_out), jnp.float32, -bound, bound)


def make_params(key, state_dim, action_dim, hidden_units=(256, 256)):
    h1, h2 = hidden_units
    in_dim = state_dim + action_dim
    k1, k2, k3 = jax.random.split(key, 3)
    return {
        "w1": xavier_uniform(k1, in_dim, h1),
        "b1": jnp.zeros((1, h1), jnp.float32),
        "w2": xavier_uniform(k2, h1, h2),
        "b2": jnp.zeros((1, h2), jnp.float32),
        "w3": xavier_uniform(k3, h2, 1),
        "b3": jnp.zeros((1, 1), jnp.float32),
    }


def prepare_params(params, state_dim):
    """One-time parameter prep (hoisted out of the per-forward path)."""
    h2 = params["w3"].shape[0]
    # Output weights as an (8, H2) slab (row 0 = w3^T, rest zero) so the final
    # transposed matmul has a sublane-aligned LHS.
    w3_rows = jnp.zeros((8, h2), jnp.float32).at[0].set(params["w3"][:, 0])
    return {
        "w1x": params["w1"][:state_dim].astype(jnp.float32),   # (S, H1)
        "w1a": params["w1"][state_dim:].astype(jnp.float32),   # (A, H1)
        "b1": params["b1"].astype(jnp.float32),                # (1, H1)
        "w2": params["w2"].astype(jnp.bfloat16),               # (H1, H2)
        "b2": params["b2"].astype(jnp.float32),                # (1, H2)
        "w3_rows": w3_rows,                                    # (8, H2)
        "b3": params["b3"].astype(jnp.float32),                # (1, 1)
    }


# ----------------------------------- main -----------------------------------

if __name__ == "__main__":
    key = jax.random.PRNGKey(0)
    kx, ka, kp = jax.random.split(key, 3)

    B, STATE_DIM, ACTION_DIM = 256, 12, 4
    HIDDEN = (256, 256)  # module default hidden_units=[256, 256]

    x = jax.random.normal(kx, (B, STATE_DIM), jnp.float32)
    a = jax.random.normal(ka, (B, ACTION_DIM), jnp.float32)
    params = make_params(kp, STATE_DIM, ACTION_DIM, HIDDEN)
    prep = prepare_params(params, STATE_DIM)

    # B=256 -> tb=128, nb=2 grid steps (keeps both v7x TensorCores busy).
    q = state_action_function_forward(x, a, prep)
    q = jax.block_until_ready(q)

    # Reference 1: same mixed-precision math as the kernel (f32 layer 1,
    # bf16 layer 2 with f32 accumulation, f32 output layer).
    h1 = jnp.maximum(x @ prep["w1x"] + a @ prep["w1a"] + prep["b1"], 0.0)
    h2 = jnp.maximum(jnp.dot(h1.astype(jnp.bfloat16), prep["w2"],
                             preferred_element_type=jnp.float32)
                     + prep["b2"], 0.0)
    ref_mixed = h2 @ params["w3"] + params["b3"]

    # Reference 2: original full-f32 module math (loose tolerance for bf16).
    xa = jnp.concatenate([x, a], axis=1)
    hf = jnp.maximum(xa @ params["w1"] + params["b1"], 0.0)
    hf = jnp.maximum(hf @ params["w2"] + params["b2"], 0.0)
    ref_f32 = hf @ params["w3"] + params["b3"]

    assert q.shape == (B, 1) and q.dtype == jnp.float32
    assert jnp.allclose(q, ref_mixed, atol=1e-2, rtol=1e-2)
    assert jnp.allclose(q, ref_f32, atol=5e-2, rtol=5e-2)

    print("KERNEL_OK")
</pallas_src>

<mosaic_0001>
module attributes {stable_mosaic.version = 11 : i64} {
  func.func @_qnet_kernel(%arg0: i32, %arg1: memref<128x12xf32, #tpu.memory_space<vmem>>, %arg2: memref<128x4xf32, #tpu.memory_space<vmem>>, %arg3: memref<12x256xf32, #tpu.memory_space<vmem>>, %arg4: memref<4x256xf32, #tpu.memory_space<vmem>>, %arg5: memref<1x256xf32, #tpu.memory_space<vmem>>, %arg6: memref<256x256xbf16, #tpu.memory_space<vmem>>, %arg7: memref<1x256xf32, #tpu.memory_space<vmem>>, %arg8: memref<8x256xf32, #tpu.memory_space<vmem>>, %arg9: memref<1x1xf32, #tpu.memory_space<vmem>>, %arg10: memref<1x1x128xf32, #tpu.memory_space<vmem>>) attributes {dimension_semantics = [#tpu.dimension_semantics<parallel>], iteration_bounds = array<i64: 2>, scalar_prefetch = 0 : i64, scratch_operands = 0 : i64, tpu.core_type = #tpu.core_type<tc>, window_params = [{transform_indices = @transform_0, window_bounds = array<i64: 128, 12>}, {transform_indices = @transform_1, window_bounds = array<i64: 128, 4>}, {pipeline_mode = #tpu.pipeline_mode<synchronous>, transform_indices = @transform_2, window_bounds = array<i64: 12, 256>}, {pipeline_mode = #tpu.pipeline_mode<synchronous>, transform_indices = @transform_3, window_bounds = array<i64: 4, 256>}, {pipeline_mode = #tpu.pipeline_mode<synchronous>, transform_indices = @transform_4, window_bounds = array<i64: 1, 256>}, {pipeline_mode = #tpu.pipeline_mode<synchronous>, transform_indices = @transform_5, window_bounds = array<i64: 256, 256>}, {pipeline_mode = #tpu.pipeline_mode<synchronous>, transform_indices = @transform_6, window_bounds = array<i64: 1, 256>}, {pipeline_mode = #tpu.pipeline_mode<synchronous>, transform_indices = @transform_7, window_bounds = array<i64: 8, 256>}, {pipeline_mode = #tpu.pipeline_mode<synchronous>, transform_indices = @transform_8, window_bounds = array<i64: 1, 1>}, {transform_indices = @transform_9, window_bounds = array<i64: 1, 1, 128>}]} {
    %c0 = arith.constant 0 : index
    %c0_0 = arith.constant 0 : index
    %0 = vector.load %arg1[%c0, %c0_0] : memref<128x12xf32, #tpu.memory_space<vmem>>, vector<128x12xf32>
    %c0_1 = arith.constant 0 : index
    %c0_2 = arith.constant 0 : index
    %1 = vector.load %arg3[%c0_1, %c0_2] : memref<12x256xf32, #tpu.memory_space<vmem>>, vector<12x256xf32>
    %cst = arith.constant dense<0.000000e+00> : vector<128x256xf32>
    %2 = tpu.matmul %0, %1, %cst {dimension_numbers = #tpu.dot_dimension_numbers<[1], [0], [0], [1], [0, 0, 1, 1], [], []>} : vector<128x12xf32>, vector<12x256xf32>, vector<128x256xf32> -> vector<128x256xf32>
    %c0_3 = arith.constant 0 : index
    %c0_4 = arith.constant 0 : index
    %3 = vector.load %arg2[%c0_3, %c0_4] : memref<128x4xf32, #tpu.memory_space<vmem>>, vector<128x4xf32>
    %c0_5 = arith.constant 0 : index
    %c0_6 = arith.constant 0 : index
    %4 = vector.load %arg4[%c0_5, %c0_6] : memref<4x256xf32, #tpu.memory_space<vmem>>, vector<4x256xf32>
    %cst_7 = arith.constant dense<0.000000e+00> : vector<128x256xf32>
    %5 = tpu.matmul %3, %4, %cst_7 {dimension_numbers = #tpu.dot_dimension_numbers<[1], [0], [0], [1], [0, 0, 1, 1], [], []>} : vector<128x4xf32>, vector<4x256xf32>, vector<128x256xf32> -> vector<128x256xf32>
    %6 = arith.addf %2, %5 : vector<128x256xf32>
    %c0_8 = arith.constant 0 : index
    %c0_9 = arith.constant 0 : index
    %7 = vector.load %arg5[%c0_8, %c0_9] : memref<1x256xf32, #tpu.memory_space<vmem>>, vector<1x256xf32>
    %8 = vector.broadcast %7 : vector<1x256xf32> to vector<128x256xf32>
    %9 = arith.addf %6, %8 : vector<128x256xf32>
    %cst_10 = arith.constant 0.000000e+00 : f32
    %10 = vector.broadcast %cst_10 : f32 to vector<128x256xf32>
    %11 = arith.maximumf %9, %10 : vector<128x256xf32>
    %12 = arith.truncf %11 : vector<128x256xf32> to vector<128x256xbf16>
    %c0_11 = arith.constant 0 : index
    %c0_12 = arith.constant 0 : index
    %13 = vector.load %arg6[%c0_11, %c0_12] : memref<256x256xbf16, #tpu.memory_space<vmem>>, vector<256x256xbf16>
    %cst_13 = arith.constant dense<0.000000e+00> : vector<128x256xf32>
    %14 = tpu.matmul %12, %13, %cst_13 {dimension_numbers = #tpu.dot_dimension_numbers<[1], [0], [0], [1], [0, 0, 1, 1], [], []>} : vector<128x256xbf16>, vector<256x256xbf16>, vector<128x256xf32> -> vector<128x256xf32>
    %c0_14 = arith.constant 0 : index
    %c0_15 = arith.constant 0 : index
    %15 = vector.load %arg7[%c0_14, %c0_15] : memref<1x256xf32, #tpu.memory_space<vmem>>, vector<1x256xf32>
    %16 = vector.broadcast %15 : vector<1x256xf32> to vector<128x256xf32>
    %17 = arith.addf %14, %16 : vector<128x256xf32>
    %cst_16 = arith.constant 0.000000e+00 : f32
    %18 = vector.broadcast %cst_16 : f32 to vector<128x256xf32>
    %19 = arith.maximumf %17, %18 : vector<128x256xf32>
    %c0_17 = arith.constant 0 : index
    %c0_18 = arith.constant 0 : index
    %20 = vector.load %arg8[%c0_17, %c0_18] : memref<8x256xf32, #tpu.memory_space<vmem>>, vector<8x256xf32>
    %cst_19 = arith.constant dense<0.000000e+00> : vector<8x128xf32>
    %21 = tpu.matmul %20, %19, %cst_19 {dimension_numbers = #tpu.dot_dimension_numbers<[1], [1], [0], [0], [0, 0, 1, 0], [], []>} : vector<8x256xf32>, vector<128x256xf32>, vector<8x128xf32> -> vector<8x128xf32>
    %22 = vector.extract_strided_slice %21 {offsets = [0, 0], sizes = [1, 128], strides = [1, 1]} : vector<8x128xf32> to vector<1x128xf32>
    %c0_20 = arith.constant 0 : index
    %c0_21 = arith.constant 0 : index
    %23 = vector.load %arg9[%c0_20, %c0_21] : memref<1x1xf32, #tpu.memory_space<vmem>>, vector<1x1xf32>
    %24 = vector.broadcast %23 : vector<1x1xf32> to vector<1x128xf32>
    %25 = arith.addf %22, %24 : vector<1x128xf32>
    %26 = vector.shape_cast %25 : vector<1x128xf32> to vector<1x1x128xf32>
    %c0_22 = arith.constant 0 : index
    %c0_23 = arith.constant 0 : index
    %c0_24 = arith.constant 0 : index
    %27 = vector.load %arg10[%c0_22, %c0_23, %c0_24] : memref<1x1x128xf32, #tpu.memory_space<vmem>>, vector<1x1x128xf32>
    tpu.vector_store %arg10[%c0_22, %c0_23, %c0_24], %26 {strides = array<i32>} : memref<1x1x128xf32, #tpu.memory_space<vmem>>, vector<1x1x128xf32>,
    return
  }
  func.func @transform_0(%arg0: i32) -> (i32, i32) {
    %c0_i32 = arith.constant 0 : i32
    %c0_i32_0 = arith.constant 0 : i32
    return %arg0, %c0_i32 : i32, i32
  }
  func.func @transform_1(%arg0: i32) -> (i32, i32) {
    %c0_i32 = arith.constant 0 : i32
    %c0_i32_0 = arith.constant 0 : i32
    return %arg0, %c0_i32 : i32, i32
  }
  func.func @transform_2(%arg0: i32) -> (i32, i32) {
    %c0_i32 = arith.constant 0 : i32
    %c0_i32_0 = arith.constant 0 : i32
    %c0_i32_1 = arith.constant 0 : i32
    return %c0_i32, %c0_i32_0 : i32, i32
  }
  func.func @transform_3(%arg0: i32) -> (i32, i32) {
    %c0_i32 = arith.constant 0 : i32
    %c0_i32_0 = arith.constant 0 : i32
    %c0_i32_1 = arith.constant 0 : i32
    return %c0_i32, %c0_i32_0 : i32, i32
  }
  func.func @transform_4(%arg0: i32) -> (i32, i32) {
    %c0_i32 = arith.constant 0 : i32
    %c0_i32_0 = arith.constant 0 : i32
    %c0_i32_1 = arith.constant 0 : i32
    return %c0_i32, %c0_i32_0 : i32, i32
  }
  func.func @transform_5(%arg0: i32) -> (i32, i32) {
    %c0_i32 = arith.constant 0 : i32
    %c0_i32_0 = arith.constant 0 : i32
    %c0_i32_1 = arith.constant 0 : i32
    return %c0_i32, %c0_i32_0 : i32, i32
  }
  func.func @transform_6(%arg0: i32) -> (i32, i32) {
    %c0_i32 = arith.constant 0 : i32
    %c0_i32_0 = arith.constant 0 : i32
    %c0_i32_1 = arith.constant 0 : i32
    return %c0_i32, %c0_i32_0 : i32, i32
  }
  func.func @transform_7(%arg0: i32) -> (i32, i32) {
    %c0_i32 = arith.constant 0 : i32
    %c0_i32_0 = arith.constant 0 : i32
    %c0_i32_1 = arith.constant 0 : i32
    return %c0_i32, %c0_i32_0 : i32, i32
  }
  func.func @transform_8(%arg0: i32) -> (i32, i32) {
    %c0_i32 = arith.constant 0 : i32
    %c0_i32_0 = arith.constant 0 : i32
    %c0_i32_1 = arith.constant 0 : i32
    return %c0_i32, %c0_i32_0 : i32, i32
  }
  func.func @transform_9(%arg0: i32) -> (i32, i32, i32) {
    %c0_i32 = arith.constant 0 : i32
    %c0_i32_0 = arith.constant 0 : i32
    %c0_i32_1 = arith.constant 0 : i32
    return %arg0, %c0_i32, %c0_i32_0 : i32, i32, i32
  }
}

</mosaic_0001>

<llo_original>
// kernel: state_action_function_forward.1
$region0: #{state_action_function_forward.1}
  #allocation0 [shape = 'u32[]', space=smem, size = 0x4, offset = 0x4, fixed_abs, tag = 'smem constant byte address 0x4 - core index']
  #allocation1 [shape = 'u32[144,128]{1,0:T(1,128)}', space=vmem, size = 0x12000, scoped, tag = 'internal scratch']
  #allocation2 [shape = 'f32[1,1]{1,0:T(1,128)S(1)}', space=vmem, size = 0x200, scoped, tag = 'scoped memory for state_action_function_forward.1']
  %s0 = inlined_call_operand.vmem [shape: f32[256,12], index: 0, kind: input, shape index: {}]
  %s1 = inlined_call_operand.vmem [shape: f32[256,4], index: 1, kind: input, shape index: {}]
  %s2 = inlined_call_operand.vmem [shape: f32[12,256], index: 2, kind: input, shape index: {}]
  %s3 = inlined_call_operand.vmem [shape: f32[4,256], index: 3, kind: input, shape index: {}]
  %s4 = inlined_call_operand.vmem [shape: f32[1,256], index: 4, kind: input, shape index: {}]
  %s5 = inlined_call_operand.vmem [shape: bf16[256,256], index: 5, kind: input, shape index: {}]
  %s6 = inlined_call_operand.vmem [shape: f32[1,256], index: 6, kind: input, shape index: {}]
  %s7 = inlined_call_operand.vmem [shape: f32[8,256], index: 7, kind: input, shape index: {}]
  %s8 = inlined_call_operand.<no memory space> [shape: f32[1,1], index: 8, kind: input, shape index: {}]
  %s9 = inlined_call_operand.hbm [shape: f32[2,1,128], index: 9, kind: output, shape index: {}]
  %s10 = sld [smem:[#allocation0]]
  $region69: #{state_action_function_forward.1} parent=0
    _
  %s12 = ssub.s32 1, %s10
  %s13 = scalar_select 0, %s12, %s10
  %v14 = vstv %s8
  %15 = vst [vmem:[#allocation2] sm:$0x1] %v14
  $region1: #{state_action_function_forward.1} parent=0
    #allocation3 [shape = 'u8[1024]{0}', space=vmem, size = 0x400, scoped, tag = 'output window, operand 0']
    #allocation4 [shape = 's32[2]{0}', space=sflag, size = 0x8, scoped, tag = 'scoped memory for state_action_function_forward.1']
    %16 = vsyncpa [#allocation4], 0
    %s17 = scalar_lea.sflag [#allocation4], 1
    %18 = vsyncpa %s17, 0
    loop: start=0, step=1, limit=4
    $region2: #{state_action_function_forward.1} parent=1 // loop_pre_header
      _
    $region3: #{state_action_function_forward.1} parent=1 // loop_header
      %s20 = sphi 0, %s24
      %p21 = scmp.ge.s32.totalorder %s20, 4
      %s30 = sphi 0, %s32
      %s33 = sphi 0, %s30
      %s34 = sphi 0, %s33
      %s50 = sphi 0, %s34
      %s56 = sphi 0, %s58
      %s59 = sphi 0, %s56
      %s60 = sphi 0, %s59
      %s76 = sphi 0, %s60
      %s80 = sphi 0, %s80
      %s82 = sphi 0, %s80
      %s83 = sphi 0, %s82
      %s97 = sphi 0, %s83
      %s101 = sphi 0, %s101
      %s103 = sphi 0, %s101
      %s104 = sphi 0, %s103
      %s118 = sphi 0, %s104
      %s122 = sphi 0, %s122
      %s124 = sphi 0, %s122
      %s125 = sphi 0, %s124
      %s139 = sphi 0, %s125
      %s143 = sphi 0, %s143
      %s145 = sphi 0, %s143
      %s146 = sphi 0, %s145
      %s160 = sphi 0, %s146
      %s164 = sphi 0, %s164
      %s166 = sphi 0, %s164
      %s167 = sphi 0, %s166
      %s181 = sphi 0, %s167
      %s185 = sphi 0, %s185
      %s187 = sphi 0, %s185
      %s188 = sphi 0, %s187
      %s202 = sphi 0, %s188
      %s206 = sphi 0, %s206
      %s208 = sphi 0, %s206
      %s209 = sphi 0, %s208
      %s223 = sphi 0, %s209
      %s229 = sphi 0, %s231
      %s232 = sphi 0, %s229
      %s233 = sphi 0, %s232
      %s249 = sphi 0, %s233
    $region4: #{state_action_function_forward.1} parent=1 // loop_header_branch
      %23 = sbr.rel (%p21) target = $region8
    $region5: #{state_action_function_forward.1} parent=1 // loop_body
      %s25 = ssub.s32 %s20, 1
      %s26 = ssub.s32 %s20, 2
      %s27 = sadd.s32 %s20, 1
      %s28 = ssub.s32 %s20, %s27
      %p29 = scmp.eq.s32.totalorder %s28, 0
      %s31 = sadd.s32 %s30, 1
      %s32 = scalar_select %p29, %s30, %s31
      %p35 = pneg %p29
      %p36 = scmp.eq.s32.totalorder %s20, 1
      %p37 = por %p35, %p36
      %p38 = scmp.ne.s32.totalorder %s30, %s33
      %p39 = scmp.eq.s32.totalorder %s20, 0
      %p40 = por %p38, %p39
      %p41 = scmp.ne.s32.totalorder %s30, %s33
      %p42 = scmp.eq.s32.totalorder %s25, 1
      %p43 = por %p41, %p42
      %p44 = scmp.ne.s32.totalorder %s33, %s34
      %p45 = scmp.eq.s32.totalorder %s25, 0
      %p46 = por %p44, %p45
      %p47 = scmp.ne.s32.totalorder %s33, %s34
      %p48 = scmp.eq.s32.totalorder %s26, 1
      %p49 = por %p47, %p48
      %p51 = scmp.ne.s32.totalorder %s34, %s50
      %p52 = scmp.eq.s32.totalorder %s26, 0
      %p53 = por %p51, %p52
      %s54 = ssub.s32 %s20, %s27
      %p55 = scmp.eq.s32.totalorder %s54, 0
      %s57 = sadd.s32 %s56, 1
      %s58 = scalar_select %p55, %s56, %s57
      %p61 = pneg %p55
      %p62 = scmp.eq.s32.totalorder %s20, 1
      %p63 = por %p61, %p62
      %p64 = scmp.ne.s32.totalorder %s56, %s59
      %p65 = scmp.eq.s32.totalorder %s20, 0
      %p66 = por %p64, %p65
      %p67 = scmp.ne.s32.totalorder %s56, %s59
      %p68 = scmp.eq.s32.totalorder %s25, 1
      %p69 = por %p67, %p68
      %p70 = scmp.ne.s32.totalorder %s59, %s60
      %p71 = scmp.eq.s32.totalorder %s25, 0
      %p72 = por %p70, %p71
      %p73 = scmp.ne.s32.totalorder %s59, %s60
      %p74 = scmp.eq.s32.totalorder %s26, 1
      %p75 = por %p73, %p74
      %p77 = scmp.ne.s32.totalorder %s60, %s76
      %p78 = scmp.eq.s32.totalorder %s26, 0
      %p79 = por %p77, %p78
      %s81 = sadd.s32 %s80, 1
      %p84 = scmp.eq.s32.totalorder %s20, 1
      %p85 = scmp.ne.s32.totalorder %s80, %s82
      %p86 = scmp.eq.s32.totalorder %s20, 0
      %p87 = por %p85, %p86
      %p88 = scmp.ne.s32.totalorder %s80, %s82
      %p89 = scmp.eq.s32.totalorder %s25, 1
      %p90 = por %p88, %p89
      %p91 = scmp.ne.s32.totalorder %s82, %s83
      %p92 = scmp.eq.s32.totalorder %s25, 0
      %p93 = por %p91, %p92
      %p94 = scmp.ne.s32.totalorder %s82, %s83
      %p95 = scmp.eq.s32.totalorder %s26, 1
      %p96 = por %p94, %p95
      %p98 = scmp.ne.s32.totalorder %s83, %s97
      %p99 = scmp.eq.s32.totalorder %s26, 0
      %p100 = por %p98, %p99
      %s102 = sadd.s32 %s101, 1
      %p105 = scmp.eq.s32.totalorder %s20, 1
      %p106 = scmp.ne.s32.totalorder %s101, %s103
      %p107 = scmp.eq.s32.totalorder %s20, 0
      %p108 = por %p106, %p107
      %p109 = scmp.ne.s32.totalorder %s101, %s103
      %p110 = scmp.eq.s32.totalorder %s25, 1
      %p111 = por %p109, %p110
      %p112 = scmp.ne.s32.totalorder %s103, %s104
      %p113 = scmp.eq.s32.totalorder %s25, 0
      %p114 = por %p112, %p113
      %p115 = scmp.ne.s32.totalorder %s103, %s104
      %p116 = scmp.eq.s32.totalorder %s26, 1
      %p117 = por %p115, %p116
      %p119 = scmp.ne.s32.totalorder %s104, %s118
      %p120 = scmp.eq.s32.totalorder %s26, 0
      %p121 = por %p119, %p120
      %s123 = sadd.s32 %s122, 1
      %p126 = scmp.eq.s32.totalorder %s20, 1
      %p127 = scmp.ne.s32.totalorder %s122, %s124
      %p128 = scmp.eq.s32.totalorder %s20, 0
      %p129 = por %p127, %p128
      %p130 = scmp.ne.s32.totalorder %s122, %s124
      %p131 = scmp.eq.s32.totalorder %s25, 1
      %p132 = por %p130, %p131
      %p133 = scmp.ne.s32.totalorder %s124, %s125
      %p134 = scmp.eq.s32.totalorder %s25, 0
      %p135 = por %p133, %p134
      %p136 = scmp.ne.s32.totalorder %s124, %s125
      %p137 = scmp.eq.s32.totalorder %s26, 1
      %p138 = por %p136, %p137
      %p140 = scmp.ne.s32.totalorder %s125, %s139
      %p141 = scmp.eq.s32.totalorder %s26, 0
      %p142 = por %p140, %p141
      %s144 = sadd.s32 %s143, 1
      %p147 = scmp.eq.s32.totalorder %s20, 1
      %p148 = scmp.ne.s32.totalorder %s143, %s145
      %p149 = scmp.eq.s32.totalorder %s20, 0
      %p150 = por %p148, %p149
      %p151 = scmp.ne.s32.totalorder %s143, %s145
      %p152 = scmp.eq.s32.totalorder %s25, 1
      %p153 = por %p151, %p152
      %p154 = scmp.ne.s32.totalorder %s145, %s146
      %p155 = scmp.eq.s32.totalorder %s25, 0
      %p156 = por %p154, %p155
      %p157 = scmp.ne.s32.totalorder %s145, %s146
      %p158 = scmp.eq.s32.totalorder %s26, 1
      %p159 = por %p157, %p158
      %p161 = scmp.ne.s32.totalorder %s146, %s160
      %p162 = scmp.eq.s32.totalorder %s26, 0
      %p163 = por %p161, %p162
      %s165 = sadd.s32 %s164, 1
      %p168 = scmp.eq.s32.totalorder %s20, 1
      %p169 = scmp.ne.s32.totalorder %s164, %s166
      %p170 = scmp.eq.s32.totalorder %s20, 0
      %p171 = por %p169, %p170
      %p172 = scmp.ne.s32.totalorder %s164, %s166
      %p173 = scmp.eq.s32.totalorder %s25, 1
      %p174 = por %p172, %p173
      %p175 = scmp.ne.s32.totalorder %s166, %s167
      %p176 = scmp.eq.s32.totalorder %s25, 0
      %p177 = por %p175, %p176
      %p178 = scmp.ne.s32.totalorder %s166, %s167
      %p179 = scmp.eq.s32.totalorder %s26, 1
      %p180 = por %p178, %p179
      %p182 = scmp.ne.s32.totalorder %s167, %s181
      %p183 = scmp.eq.s32.totalorder %s26, 0
      %p184 = por %p182, %p183
      %s186 = sadd.s32 %s185, 1
      %p189 = scmp.eq.s32.totalorder %s20, 1
      %p190 = scmp.ne.s32.totalorder %s185, %s187
      %p191 = scmp.eq.s32.totalorder %s20, 0
      %p192 = por %p190, %p191
      %p193 = scmp.ne.s32.totalorder %s185, %s187
      %p194 = scmp.eq.s32.totalorder %s25, 1
      %p195 = por %p193, %p194
      %p196 = scmp.ne.s32.totalorder %s187, %s188
      %p197 = scmp.eq.s32.totalorder %s25, 0
      %p198 = por %p196, %p197
      %p199 = scmp.ne.s32.totalorder %s187, %s188
      %p200 = scmp.eq.s32.totalorder %s26, 1
      %p201 = por %p199, %p200
      %p203 = scmp.ne.s32.totalorder %s188, %s202
      %p204 = scmp.eq.s32.totalorder %s26, 0
      %p205 = por %p203, %p204
      %s207 = sadd.s32 %s206, 1
      %p210 = scmp.eq.s32.totalorder %s20, 1
      %p211 = scmp.ne.s32.totalorder %s206, %s208
      %p212 = scmp.eq.s32.totalorder %s20, 0
      %p213 = por %p211, %p212
      %p214 = scmp.ne.s32.totalorder %s206, %s208
      %p215 = scmp.eq.s32.totalorder %s25, 1
      %p216 = por %p214, %p215
      %p217 = scmp.ne.s32.totalorder %s208, %s209
      %p218 = scmp.eq.s32.totalorder %s25, 0
      %p219 = por %p217, %p218
      %p220 = scmp.ne.s32.totalorder %s208, %s209
      %p221 = scmp.eq.s32.totalorder %s26, 1
      %p222 = por %p220, %p221
      %p224 = scmp.ne.s32.totalorder %s209, %s223
      %p225 = scmp.eq.s32.totalorder %s26, 0
      %p226 = por %p224, %p225
      %s227 = ssub.s32 %s20, %s27
      %p228 = scmp.eq.s32.totalorder %s227, 0
      %s230 = sadd.s32 %s229, 1
      %s231 = scalar_select %p228, %s229, %s230
      %p234 = pneg %p228
      %p235 = scmp.eq.s32.totalorder %s20, 1
      %p236 = por %p234, %p235
      %p237 = scmp.ne.s32.totalorder %s229, %s232
      %p238 = scmp.eq.s32.totalorder %s20, 0
      %p239 = por %p237, %p238
      %p240 = scmp.ne.s32.totalorder %s229, %s232
      %p241 = scmp.eq.s32.totalorder %s25, 1
      %p242 = por %p240, %p241
      %p243 = scmp.ne.s32.totalorder %s232, %s233
      %p244 = scmp.eq.s32.totalorder %s25, 0
      %p245 = por %p243, %p244
      %p246 = scmp.ne.s32.totalorder %s232, %s233
      %p247 = scmp.eq.s32.totalorder %s26, 1
      %p248 = por %p246, %p247
      %p250 = scmp.ne.s32.totalorder %s233, %s249
      %p251 = scmp.eq.s32.totalorder %s26, 0
      %p252 = por %p250, %p251
      %p253 = scmp.le.s32.totalorder 1, %s20
      %p254 = scmp.lt.s32.totalorder %s20, 3
      %p255 = pnand %p253, %p254
      %p256 = pneg %p255
      // Predicated region
      $region9: #{state_action_function_forward.1} parent=5 // pred_check
        _
      $region10: #{state_action_function_forward.1} parent=5 // pred_check_branch
        %258 = sbr.rel (%p255) target = $region12
      $region11: #{state_action_function_forward.1} parent=5 // pred_region
        %s259 = ssub.s32 %s20, 1
        // Predicated region
        $region13: #{state_action_function_forward.1} parent=11 // pred_check
          %p260 = pneg %p93
        $region14: #{state_action_function_forward.1} parent=11 // pred_check_branch
          %262 = sbr.rel (%p260) target = $region16
        $region15: #{state_action_function_forward.1} parent=11 // pred_region
          _
        $region16: #{state_action_function_forward.1} parent=11 // pred_fallthru
          _
        // Predicated region
        $region17: #{state_action_function_forward.1} parent=11 // pred_check
          %p263 = pneg %p114
        $region18: #{state_action_function_forward.1} parent=11 // pred_check_branch
          %265 = sbr.rel (%p263) target = $region20
        $region19: #{state_action_function_forward.1} parent=11 // pred_region
          _
        $region20: #{state_action_function_forward.1} parent=11 // pred_fallthru
          _
        // Predicated region
        $region21: #{state_action_function_forward.1} parent=11 // pred_check
          %p266 = pneg %p135
        $region22: #{state_action_function_forward.1} parent=11 // pred_check_branch
          %268 = sbr.rel (%p266) target = $region24
        $region23: #{state_action_function_forward.1} parent=11 // pred_region
          _
        $region24: #{state_action_function_forward.1} parent=11 // pred_fallthru
          _
        // Predicated region
        $region25: #{state_action_function_forward.1} parent=11 // pred_check
          %p269 = pneg %p156
        $region26: #{state_action_function_forward.1} parent=11 // pred_check_branch
          %271 = sbr.rel (%p269) target = $region28
        $region27: #{state_action_function_forward.1} parent=11 // pred_region
          _
        $region28: #{state_action_function_forward.1} parent=11 // pred_fallthru
          _
        // Predicated region
        $region29: #{state_action_function_forward.1} parent=11 // pred_check
          %p272 = pneg %p177
        $region30: #{state_action_function_forward.1} parent=11 // pred_check_branch
          %274 = sbr.rel (%p272) target = $region32
        $region31: #{state_action_function_forward.1} parent=11 // pred_region
          _
        $region32: #{state_action_function_forward.1} parent=11 // pred_fallthru
          _
        // Predicated region
        $region33: #{state_action_function_forward.1} parent=11 // pred_check
          %p275 = pneg %p198
        $region34: #{state_action_function_forward.1} parent=11 // pred_check_branch
          %277 = sbr.rel (%p275) target = $region36
        $region35: #{state_action_function_forward.1} parent=11 // pred_region
          _
        $region36: #{state_action_function_forward.1} parent=11 // pred_fallthru
          _
        // Predicated region
        $region37: #{state_action_function_forward.1} parent=11 // pred_check
          %p278 = pneg %p219
        $region38: #{state_action_function_forward.1} parent=11 // pred_check_branch
          %280 = sbr.rel (%p278) target = $region40
        $region39: #{state_action_function_forward.1} parent=11 // pred_region
          _
        $region40: #{state_action_function_forward.1} parent=11 // pred_fallthru
          _
      $region12: #{state_action_function_forward.1} parent=5 // pred_fallthru
        _
      %p281 = scmp.lt.s32.totalorder %s20, 2
      // Predicated region
      $region41: #{state_action_function_forward.1} parent=5 // pred_check
        %p282 = pneg %p281
      $region42: #{state_action_function_forward.1} parent=5 // pred_check_branch
        %284 = sbr.rel (%p282) target = $region44
      $region43: #{state_action_function_forward.1} parent=5 // pred_region
        // Predicated region
        $region45: #{state_action_function_forward.1} parent=43 // pred_check
          %p285 = pneg %p40
        $region46: #{state_action_function_forward.1} parent=43 // pred_check_branch
          %287 = sbr.rel (%p285) target = $region48
        $region47: #{state_action_function_forward.1} parent=43 // pred_region
          %s288 = smul.u32 16, %s20
          %p289 = scmp.lt.s32.totalorder %s288, 31
          %s290 = scalar_select %p289, %s288, 31
          %s291 = smul.addr %s290, 8
          %s292 = scalar_lea.vmem %s0, %s291
          %s293 = smul.u32 16, %s20
        $region48: #{state_action_function_forward.1} parent=43 // pred_fallthru
          _
        // Predicated region
        $region49: #{state_action_function_forward.1} parent=43 // pred_check
          %p294 = pneg %p66
        $region50: #{state_action_function_forward.1} parent=43 // pred_check_branch
          %296 = sbr.rel (%p294) target = $region52
        $region51: #{state_action_function_forward.1} parent=43 // pred_region
          %s297 = smul.u32 16, %s20
          %p298 = scmp.lt.s32.totalorder %s297, 31
          %s299 = scalar_select %p298, %s297, 31
          %s300 = smul.addr %s299, 8
          %s301 = scalar_lea.vmem %s1, %s300
          %s302 = smul.u32 16, %s20
        $region52: #{state_action_function_forward.1} parent=43 // pred_fallthru
          _
      $region44: #{state_action_function_forward.1} parent=5 // pred_fallthru
        _
      %p303 = scmp.le.s32.totalorder 1, %s20
      %p304 = scmp.lt.s32.totalorder %s20, 3
      %p305 = pnand %p303, %p304
      %p306 = pneg %p305
      // Predicated region
      $region53: #{state_action_function_forward.1} parent=5 // pred_check
        _
      $region54: #{state_action_function_forward.1} parent=5 // pred_check_branch
        %308 = sbr.rel (%p305) target = $region56
      $region55: #{state_action_function_forward.1} parent=5 // pred_region
        %s309 = ssub.s32 %s20, 1
        %s310 = smul.u32 16, %s25
        %p311 = scmp.lt.s32.totalorder %s310, 31
        %s312 = scalar_select %p311, %s310, 31
        %s313 = smul.addr %s312, 8
        %s314 = scalar_lea.vmem %s0, %s313
        %p315 = pneg %p46
        %p316 = pneg %p43
        %s317 = smul.u32 16, %s25
        %p318 = scmp.lt.s32.totalorder %s317, 31
        %s319 = scalar_select %p318, %s317, 31
        %s320 = smul.addr %s319, 8
        %s321 = scalar_lea.vmem %s1, %s320
        %p322 = pneg %p72
        %p323 = pneg %p69
        %p324 = pneg %p93
        %p325 = pneg %p90
        %p326 = pneg %p114
        %p327 = pneg %p111
        %p328 = pneg %p135
        %p329 = pneg %p132
        %p330 = pneg %p156
        %p331 = pneg %p153
        %p332 = pneg %p177
        %p333 = pneg %p174
        %p334 = pneg %p198
        %p335 = pneg %p195
        %p336 = pneg %p219
        %p337 = pneg %p216
        %p338 = pneg %p245
        %p339 = pneg %p242
        %s340 = sand.u32 %s232, 1
        %s341 = scalar_lea.sflag [#allocation4], %s340
        %s342 = sand.u32 %s232, 1
        %s343 = scalar_lea.vmem [#allocation3], %s342
        %s344 = smul.u32 16, %s25
        %p345 = scmp.lt.s32.totalorder %s344, 31
        %s346 = scalar_select %p345, %s344, 31
        %s347 = smul.addr %s346, 8
        %s348 = scalar_lea.vmem %s0, %s347
        %s349 = smul.u32 16, %s25
        %s350 = smul.u32 16, %s25
        %p351 = scmp.lt.s32.totalorder %s350, 31
        %s352 = scalar_select %p351, %s350, 31
        %s353 = smul.addr %s352, 8
        %s354 = scalar_lea.vmem %s1, %s353
        %s355 = smul.u32 16, %s25
        %v356 = vld [vmem:[%s348] sm:$0xff]
        %v357 = vld [vmem:[%s348 + $0x8] sm:$0xff]
        %v358 = vld [vmem:[%s348 + $0x10] sm:$0xff]
        %v359 = vld [vmem:[%s348 + $0x18] sm:$0xff]
        %v360 = vld [vmem:[%s348 + $0x20] sm:$0xff]
        %v361 = vld [vmem:[%s348 + $0x28] sm:$0xff]
        %v362 = vld [vmem:[%s348 + $0x30] sm:$0xff]
        %v363 = vld [vmem:[%s348 + $0x38] sm:$0xff]
        %v364 = vld [vmem:[%s348 + $0x40] sm:$0xff]
        %v365 = vld [vmem:[%s348 + $0x48] sm:$0xff]
        %v366 = vld [vmem:[%s348 + $0x50] sm:$0xff]
        %v367 = vld [vmem:[%s348 + $0x58] sm:$0xff]
        %v368 = vld [vmem:[%s348 + $0x60] sm:$0xff]
        %v369 = vld [vmem:[%s348 + $0x68] sm:$0xff]
        %v370 = vld [vmem:[%s348 + $0x70] sm:$0xff]
        %v371 = vld [vmem:[%s348 + $0x78] sm:$0xff]
        %v372 = vld [vmem:[%s2] sm:$0xff]
        %v373 = vld [vmem:[%s2 + $0x8] sm:$0xff]
        %v374 = vld [vmem:[%s2 + $0x10] sm:$0xf]
        %v375 = vld [vmem:[%s2 + $0x18] sm:$0xf]
        %v376 = vld [vmem:[%s354] sm:$0xff]
        %v377 = vld [vmem:[%s354 + $0x8] sm:$0xff]
        %v378 = vld [vmem:[%s354 + $0x10] sm:$0xff]
        %v379 = vld [vmem:[%s354 + $0x18] sm:$0xff]
        %v380 = vld [vmem:[%s354 + $0x20] sm:$0xff]
        %v381 = vld [vmem:[%s354 + $0x28] sm:$0xff]
        %v382 = vld [vmem:[%s354 + $0x30] sm:$0xff]
        %v383 = vld [vmem:[%s354 + $0x38] sm:$0xff]
        %v384 = vld [vmem:[%s354 + $0x40] sm:$0xff]
        %v385 = vld [vmem:[%s354 + $0x48] sm:$0xff]
        %v386 = vld [vmem:[%s354 + $0x50] sm:$0xff]
        %v387 = vld [vmem:[%s354 + $0x58] sm:$0xff]
        %v388 = vld [vmem:[%s354 + $0x60] sm:$0xff]
        %v389 = vld [vmem:[%s354 + $0x68] sm:$0xff]
        %v390 = vld [vmem:[%s354 + $0x70] sm:$0xff]
        %v391 = vld [vmem:[%s354 + $0x78] sm:$0xff]
        %v392 = vld [vmem:[%s3] sm:$0xff]
        %v394 = vcombine.high %v392, %v392
        %vm395 = vcmask 31744
        %v397 = vsel %vm395, %v376, 0
        %v400 = vsel %vm395, %v377, 0
        %v403 = vsel %vm395, %v378, 0
        %v406 = vsel %vm395, %v379, 0
        %v409 = vsel %vm395, %v380, 0
        %v412 = vsel %vm395, %v381, 0
        %v415 = vsel %vm395, %v382, 0
        %v418 = vsel %vm395, %v383, 0
        %v421 = vsel %vm395, %v384, 0
        %v424 = vsel %vm395, %v385, 0
        %v427 = vsel %vm395, %v386, 0
        %v430 = vsel %vm395, %v387, 0
        %v433 = vsel %vm395, %v388, 0
        %v436 = vsel %vm395, %v389, 0
        %v439 = vsel %vm395, %v390, 0
        %v442 = vsel %vm395, %v391, 0
        %vm444 = vcmask 1043456
        %v445 = vsel %vm444, %v392, 0
        %v447 = vsel %vm444, %v394, 0
        %449 = vmatprep.subr.mxu0 %v447
        %450 = vmatpush1.msra.mxu0 %v445
        %451 = vmatprep.subr.mxu0 0.0
        %452 = vmatpush1.msra.mxu0 0.0
        %453 = vmatprep.subr.mxu0 0.0
        %454 = vmatpush1.msra.mxu0 0.0
        %455 = vmatprep.subr.mxu0 0.0
        %456 = vmatpush1.msra.mxu0 0.0
        %457 = vmatprep.subr.mxu0 0.0
        %458 = vmatpush1.msra.mxu0 0.0
        %459 = vmatprep.subr.mxu0 0.0
        %460 = vmatpush1.msra.mxu0 0.0
        %461 = vmatprep.subr.mxu0 0.0
        %462 = vmatpush1.msra.mxu0 0.0
        %463 = vmatprep.subr.mxu0 0.0
        %464 = vmatpush1.msra.mxu0 0.0
        %465 = vmatprep.subr.mxu0 0.0
        %466 = vmatpush1.msra.mxu0 0.0
        %467 = vmatprep.subr.mxu0 0.0
        %468 = vmatpush1.msra.mxu0 0.0
        %469 = vmatprep.subr.mxu0 0.0
        %470 = vmatpush1.msra.mxu0 0.0
        %471 = vmatprep.subr.mxu0 0.0
        %472 = vmatpush1.msra.mxu0 0.0
        %473 = vmatprep.subr.mxu0 0.0
        %474 = vmatpush1.msra.mxu0 0.0
        %475 = vmatprep.subr.mxu0 0.0
        %476 = vmatpush1.msra.mxu0 0.0
        %477 = vmatprep.subr.mxu0 0.0
        %478 = vmatpush1.msra.mxu0 0.0
        %479 = vmatprep.subr.mxu0 0.0
        %480 = vmatpush1.msra.mxu0 0.0
        %481 = vmatprep.subr.mxu0 0.0
        %482 = vmatpush1.msra.mxu0 0.0
        %483 = vmatprep.subr.mxu0 0.0
        %484 = vmatpush1.msra.mxu0 0.0
        %485 = vmatprep.subr.mxu0 0.0
        %486 = vmatpush1.msra.mxu0 0.0
        %487 = vmatprep.subr.mxu0 0.0
        %488 = vmatpush1.msra.mxu0 0.0
        %489 = vmatprep.subr.mxu0 0.0
        %490 = vmatpush1.msra.mxu0 0.0
        %491 = vmatprep.subr.mxu0 0.0
        %492 = vmatpush1.msra.mxu0 0.0
        %493 = vmatprep.subr.mxu0 0.0
        %494 = vmatpush1.msra.mxu0 0.0
        %495 = vmatprep.subr.mxu0 0.0
        %496 = vmatpush1.msra.mxu0 0.0
        %497 = vmatprep.subr.mxu0 0.0
        %498 = vmatpush1.msra.mxu0 0.0
        %499 = vmatprep.subr.mxu0 0.0
        %500 = vmatpush1.msra.mxu0 0.0
        %501 = vmatprep.subr.mxu0 0.0
        %502 = vmatpush1.msra.mxu0 0.0
        %503 = vmatprep.subr.mxu0 0.0
        %504 = vmatpush1.msra.mxu0 0.0
        %505 = vmatprep.subr.mxu0 0.0
        %506 = vmatpush1.msra.mxu0 0.0
        %507 = vmatprep.subr.mxu0 0.0
        %508 = vmatpush1.msra.mxu0 0.0
        %509 = vmatprep.subr.mxu0 0.0
        %510 = vmatpush1.msra.mxu0 0.0
        %511 = vmatprep.subr.mxu0 0.0
        %512 = vmatpush1.msra.mxu0 0.0
        %513 = vmatprep.mubr.f32.mxu0 0.0
        %514 = vmatmul.mubr.f32.gmra.mrb[0].mxu0 %v397
        %v515 = vpop.f32.mrb[0].mxu0
        %v516 = vadd.f32 0.0, %v515
        %v517 = vpop.f32.mrb[0].mxu0
        %v518 = vadd.f32 0.0, %v517
        %519 = vmatprep.mubr.f32.mxu0 0.0
        %520 = vmatmul.mubr.f32.gmra.mrb[0].mxu0 %v400
        %v521 = vpop.f32.mrb[0].mxu0
        %v522 = vadd.f32 0.0, %v521
        %v523 = vpop.f32.mrb[0].mxu0
        %v524 = vadd.f32 0.0, %v523
        %525 = vmatprep.mubr.f32.mxu0 0.0
        %526 = vmatmul.mubr.f32.gmra.mrb[0].mxu0 %v403
        %v527 = vpop.f32.mrb[0].mxu0
        %v528 = vadd.f32 0.0, %v527
        %v529 = vpop.f32.mrb[0].mxu0
        %v530 = vadd.f32 0.0, %v529
        %531 = vmatprep.mubr.f32.mxu0 0.0
        %532 = vmatmul.mubr.f32.gmra.mrb[0].mxu0 %v406
        %v533 = vpop.f32.mrb[0].mxu0
        %v534 = vadd.f32 0.0, %v533
        %v535 = vpop.f32.mrb[0].mxu0
        %v536 = vadd.f32 0.0, %v535
        %537 = vmatprep.mubr.f32.mxu0 0.0
        %538 = vmatmul.mubr.f32.gmra.mrb[0].mxu0 %v409
        %v539 = vpop.f32.mrb[0].mxu0
        %v540 = vadd.f32 0.0, %v539
        %v541 = vpop.f32.mrb[0].mxu0
        %v542 = vadd.f32 0.0, %v541
        %543 = vmatprep.mubr.f32.mxu0 0.0
        %544 = vmatmul.mubr.f32.gmra.mrb[0].mxu0 %v412
        %v545 = vpop.f32.mrb[0].mxu0
        %v546 = vadd.f32 0.0, %v545
        %v547 = vpop.f32.mrb[0].mxu0
        %v548 = vadd.f32 0.0, %v547
        %549 = vmatprep.mubr.f32.mxu0 0.0
        %550 = vmatmul.mubr.f32.gmra.mrb[0].mxu0 %v415
        %v551 = vpop.f32.mrb[0].mxu0
        %v552 = vadd.f32 0.0, %v551
        %v553 = vpop.f32.mrb[0].mxu0
        %v554 = vadd.f32 0.0, %v553
        %555 = vmatprep.mubr.f32.mxu0 0.0
        %556 = vmatmul.mubr.f32.gmra.mrb[0].mxu0 %v418
        %v557 = vpop.f32.mrb[0].mxu0
        %v558 = vadd.f32 0.0, %v557
        %v559 = vpop.f32.mrb[0].mxu0
        %v560 = vadd.f32 0.0, %v559
        %561 = vmatprep.mubr.f32.mxu0 0.0
        %562 = vmatmul.mubr.f32.gmra.mrb[0].mxu0 %v421
        %v563 = vpop.f32.mrb[0].mxu0
        %v564 = vadd.f32 0.0, %v563
        %v565 = vpop.f32.mrb[0].mxu0
        %v566 = vadd.f32 0.0, %v565
        %567 = vmatprep.mubr.f32.mxu0 0.0
        %568 = vmatmul.mubr.f32.gmra.mrb[0].mxu0 %v424
        %v569 = vpop.f32.mrb[0].mxu0
        %v570 = vadd.f32 0.0, %v569
        %v571 = vpop.f32.mrb[0].mxu0
        %v572 = vadd.f32 0.0, %v571
        %573 = vmatprep.mubr.f32.mxu0 0.0
        %574 = vmatmul.mubr.f32.gmra.mrb[0].mxu0 %v427
        %v575 = vpop.f32.mrb[0].mxu0
        %v576 = vadd.f32 0.0, %v575
        %v577 = vpop.f32.mrb[0].mxu0
        %v578 = vadd.f32 0.0, %v577
        %579 = vmatprep.mubr.f32.mxu0 0.0
        %580 = vmatmul.mubr.f32.gmra.mrb[0].mxu0 %v430
        %v581 = vpop.f32.mrb[0].mxu0
        %v582 = vadd.f32 0.0, %v581
        %v583 = vpop.f32.mrb[0].mxu0
        %v584 = vadd.f32 0.0, %v583
        %585 = vmatprep.mubr.f32.mxu0 0.0
        %586 = vmatmul.mubr.f32.gmra.mrb[0].mxu0 %v433
        %v587 = vpop.f32.mrb[0].mxu0
        %v588 = vadd.f32 0.0, %v587
        %v589 = vpop.f32.mrb[0].mxu0
        %v590 = vadd.f32 0.0, %v589
        %591 = vmatprep.mubr.f32.mxu0 0.0
        %592 = vmatmul.mubr.f32.gmra.mrb[0].mxu0 %v436
        %v593 = vpop.f32.mrb[0].mxu0
        %v594 = vadd.f32 0.0, %v593
        %v595 = vpop.f32.mrb[0].mxu0
        %v596 = vadd.f32 0.0, %v595
        %597 = vmatprep.mubr.f32.mxu0 0.0
        %598 = vmatmul.mubr.f32.gmra.mrb[0].mxu0 %v439
        %v599 = vpop.f32.mrb[0].mxu0
        %v600 = vadd.f32 0.0, %v599
        %v601 = vpop.f32.mrb[0].mxu0
        %v602 = vadd.f32 0.0, %v601
        %603 = vmatprep.mubr.f32.mxu0 0.0
        %604 = vmatmul.mubr.f32.gmra.mrb[0].mxu0 %v442
        %v605 = vpop.f32.mrb[0].mxu0
        %v606 = vadd.f32 0.0, %v605
        %v607 = vpop.f32.mrb[0].mxu0
        %v608 = vadd.f32 0.0, %v607
        %609 = vdwg.mxu0
        %vm610 = vcmask 97280
        %v612 = vsel %vm610, %v356, 0
        %v615 = vsel %vm610, %v357, 0
        %v618 = vsel %vm610, %v358, 0
        %v621 = vsel %vm610, %v359, 0
        %v624 = vsel %vm610, %v360, 0
        %v627 = vsel %vm610, %v361, 0
        %v630 = vsel %vm610, %v362, 0
        %v633 = vsel %vm610, %v363, 0
        %v636 = vsel %vm610, %v364, 0
        %v639 = vsel %vm610, %v365, 0
        %v642 = vsel %vm610, %v366, 0
        %v645 = vsel %vm610, %v367, 0
        %v648 = vsel %vm610, %v368, 0
        %v651 = vsel %vm610, %v369, 0
        %v654 = vsel %vm610, %v370, 0
        %v657 = vsel %vm610, %v371, 0
        %v660 = vsel %vm444, %v374, 0
        %v663 = vsel %vm444, %v375, 0
        %665 = vmatprep.subr.mxu0 %v373
        %666 = vmatpush1.msra.mxu0 %v372
        %667 = vmatprep.subr.mxu0 %v663
        %668 = vmatpush1.msra.mxu0 %v660
        %669 = vmatprep.subr.mxu0 0.0
        %670 = vmatpush1.msra.mxu0 0.0
        %671 = vmatprep.subr.mxu0 0.0
        %672 = vmatpush1.msra.mxu0 0.0
        %673 = vmatprep.subr.mxu0 0.0
        %674 = vmatpush1.msra.mxu0 0.0
        %675 = vmatprep.subr.mxu0 0.0
        %676 = vmatpush1.msra.mxu0 0.0
        %677 = vmatprep.subr.mxu0 0.0
        %678 = vmatpush1.msra.mxu0 0.0
        %679 = vmatprep.subr.mxu0 0.0
        %680 = vmatpush1.msra.mxu0 0.0
        %681 = vmatprep.subr.mxu0 0.0
        %682 = vmatpush1.msra.mxu0 0.0
        %683 = vmatprep.subr.mxu0 0.0
        %684 = vmatpush1.msra.mxu0 0.0
        %685 = vmatprep.subr.mxu0 0.0
        %686 = vmatpush1.msra.mxu0 0.0
        %687 = vmatprep.subr.mxu0 0.0
        %688 = vmatpush1.msra.mxu0 0.0
        %689 = vmatprep.subr.mxu0 0.0
        %690 = vmatpush1.msra.mxu0 0.0
        %691 = vmatprep.subr.mxu0 0.0
        %692 = vmatpush1.msra.mxu0 0.0
        %693 = vmatprep.subr.mxu0 0.0
        %694 = vmatpush1.msra.mxu0 0.0
        %695 = vmatprep.subr.mxu0 0.0
        %696 = vmatpush1.msra.mxu0 0.0
        %697 = vmatprep.subr.mxu0 0.0
        %698 = vmatpush1.msra.mxu0 0.0
        %699 = vmatprep.subr.mxu0 0.0
        %700 = vmatpush1.msra.mxu0 0.0
        %701 = vmatprep.subr.mxu0 0.0
        %702 = vmatpush1.msra.mxu0 0.0
        %703 = vmatprep.subr.mxu0 0.0
        %704 = vmatpush1.msra.mxu0 0.0
        %705 = vmatprep.subr.mxu0 0.0
        %706 = vmatpush1.msra.mxu0 0.0
        %707 = vmatprep.subr.mxu0 0.0
        %708 = vmatpush1.msra.mxu0 0.0
        %709 = vmatprep.subr.mxu0 0.0
        %710 = vmatpush1.msra.mxu0 0.0
        %711 = vmatprep.subr.mxu0 0.0
        %712 = vmatpush1.msra.mxu0 0.0
        %713 = vmatprep.subr.mxu0 0.0
        %714 = vmatpush1.msra.mxu0 0.0
        %715 = vmatprep.subr.mxu0 0.0
        %716 = vmatpush1.msra.mxu0 0.0
        %717 = vmatprep.subr.mxu0 0.0
        %718 = vmatpush1.msra.mxu0 0.0
        %719 = vmatprep.subr.mxu0 0.0
        %720 = vmatpush1.msra.mxu0 0.0
        %721 = vmatprep.subr.mxu0 0.0
        %722 = vmatpush1.msra.mxu0 0.0
        %723 = vmatprep.subr.mxu0 0.0
        %724 = vmatpush1.msra.mxu0 0.0
        %725 = vmatprep.subr.mxu0 0.0
        %726 = vmatpush1.msra.mxu0 0.0
        %727 = vmatprep.subr.mxu0 0.0
        %728 = vmatpush1.msra.mxu0 0.0
        %729 = vmatprep.mubr.f32.mxu0 0.0
        %730 = vmatmul.mubr.f32.gmra.mrb[0].mxu0 %v612
        %v731 = vpop.f32.mrb[0].mxu0
        %v732 = vadd.f32 %v516, %v731
        %v733 = vpop.f32.mrb[0].mxu0
        %v734 = vadd.f32 %v518, %v733
        %735 = vmatprep.mubr.f32.mxu0 0.0
        %736 = vmatmul.mubr.f32.gmra.mrb[0].mxu0 %v615
        %v737 = vpop.f32.mrb[0].mxu0
        %v738 = vadd.f32 %v522, %v737
        %v739 = vpop.f32.mrb[0].mxu0
        %v740 = vadd.f32 %v524, %v739
        %741 = vmatprep.mubr.f32.mxu0 0.0
        %742 = vmatmul.mubr.f32.gmra.mrb[0].mxu0 %v618
        %v743 = vpop.f32.mrb[0].mxu0
        %v744 = vadd.f32 %v528, %v743
        %v745 = vpop.f32.mrb[0].mxu0
        %v746 = vadd.f32 %v530, %v745
        %747 = vmatprep.mubr.f32.mxu0 0.0
        %748 = vmatmul.mubr.f32.gmra.mrb[0].mxu0 %v621
        %v749 = vpop.f32.mrb[0].mxu0
        %v750 = vadd.f32 %v534, %v749
        %v751 = vpop.f32.mrb[0].mxu0
        %v752 = vadd.f32 %v536, %v751
        %753 = vmatprep.mubr.f32.mxu0 0.0
        %754 = vmatmul.mubr.f32.gmra.mrb[0].mxu0 %v624
        %v755 = vpop.f32.mrb[0].mxu0
        %v756 = vadd.f32 %v540, %v755
        %v757 = vpop.f32.mrb[0].mxu0
        %v758 = vadd.f32 %v542, %v757
        %759 = vmatprep.mubr.f32.mxu0 0.0
        %760 = vmatmul.mubr.f32.gmra.mrb[0].mxu0 %v627
        %v761 = vpop.f32.mrb[0].mxu0
        %v762 = vadd.f32 %v546, %v761
        %v763 = vpop.f32.mrb[0].mxu0
        %v764 = vadd.f32 %v548, %v763
        %765 = vmatprep.mubr.f32.mxu0 0.0
        %766 = vmatmul.mubr.f32.gmra.mrb[0].mxu0 %v630
        %v767 = vpop.f32.mrb[0].mxu0
        %v768 = vadd.f32 %v552, %v767
        %v769 = vpop.f32.mrb[0].mxu0
        %v770 = vadd.f32 %v554, %v769
        %771 = vmatprep.mubr.f32.mxu0 0.0
        %772 = vmatmul.mubr.f32.gmra.mrb[0].mxu0 %v633
        %v773 = vpop.f32.mrb[0].mxu0
        %v774 = vadd.f32 %v558, %v773
        %v775 = vpop.f32.mrb[0].mxu0
        %v776 = vadd.f32 %v560, %v775
        %777 = vmatprep.mubr.f32.mxu0 0.0
        %778 = vmatmul.mubr.f32.gmra.mrb[0].mxu0 %v636
        %v779 = vpop.f32.mrb[0].mxu0
        %v780 = vadd.f32 %v564, %v779
        %v781 = vpop.f32.mrb[0].mxu0
        %v782 = vadd.f32 %v566, %v781
        %783 = vmatprep.mubr.f32.mxu0 0.0
        %784 = vmatmul.mubr.f32.gmra.mrb[0].mxu0 %v639
        %v785 = vpop.f32.mrb[0].mxu0
        %v786 = vadd.f32 %v570, %v785
        %v787 = vpop.f32.mrb[0].mxu0
        %v788 = vadd.f32 %v572, %v787
        %789 = vmatprep.mubr.f32.mxu0 0.0
        %790 = vmatmul.mubr.f32.gmra.mrb[0].mxu0 %v642
        %v791 = vpop.f32.mrb[0].mxu0
        %v792 = vadd.f32 %v576, %v791
        %v793 = vpop.f32.mrb[0].mxu0
        %v794 = vadd.f32 %v578, %v793
        %795 = vmatprep.mubr.f32.mxu0 0.0
        %796 = vmatmul.mubr.f32.gmra.mrb[0].mxu0 %v645
        %v797 = vpop.f32.mrb[0].mxu0
        %v798 = vadd.f32 %v582, %v797
        %v799 = vpop.f32.mrb[0].mxu0
        %v800 = vadd.f32 %v584, %v799
        %801 = vmatprep.mubr.f32.mxu0 0.0
        %802 = vmatmul.mubr.f32.gmra.mrb[0].mxu0 %v648
        %v803 = vpop.f32.mrb[0].mxu0
        %v804 = vadd.f32 %v588, %v803
        %v805 = vpop.f32.mrb[0].mxu0
        %v806 = vadd.f32 %v590, %v805
        %807 = vmatprep.mubr.f32.mxu0 0.0
        %808 = vmatmul.mubr.f32.gmra.mrb[0].mxu0 %v651
        %v809 = vpop.f32.mrb[0].mxu0
        %v810 = vadd.f32 %v594, %v809
        %v811 = vpop.f32.mrb[0].mxu0
        %v812 = vadd.f32 %v596, %v811
        %813 = vmatprep.mubr.f32.mxu0 0.0
        %814 = vmatmul.mubr.f32.gmra.mrb[0].mxu0 %v654
        %v815 = vpop.f32.mrb[0].mxu0
        %v816 = vadd.f32 %v600, %v815
        %v817 = vpop.f32.mrb[0].mxu0
        %v818 = vadd.f32 %v602, %v817
        %819 = vmatprep.mubr.f32.mxu0 0.0
        %820 = vmatmul.mubr.f32.gmra.mrb[0].mxu0 %v657
        %v821 = vpop.f32.mrb[0].mxu0
        %v822 = vadd.f32 %v606, %v821
        %v823 = vpop.f32.mrb[0].mxu0
        %v824 = vadd.f32 %v608, %v823
        %825 = vdwg.mxu0
        %v826 = vld [vmem:[%s4] sm:$0x3]
        %v828 = vlaneseq
        %v829 = vshrl.u32 %v828, 7
        %v830 = vsub.s32 0, %v829
        %v831 = vrot.slane %v826, %v830
        %v832 = vlaneseq
        %v833 = vshrl.u32 %v832, 7
        %v834 = vsub.s32 1, %v833
        %v835 = vrot.slane %v826, %v834
        %v838 = vadd.f32 %v732, %v831
        %v839 = vadd.f32 %v734, %v835
        %v840 = vadd.f32 %v738, %v831
        %v841 = vadd.f32 %v740, %v835
        %v842 = vadd.f32 %v744, %v831
        %v843 = vadd.f32 %v746, %v835
        %v844 = vadd.f32 %v750, %v831
        %v845 = vadd.f32 %v752, %v835
        %v846 = vadd.f32 %v756, %v831
        %v847 = vadd.f32 %v758, %v835
        %v848 = vadd.f32 %v762, %v831
        %v849 = vadd.f32 %v764, %v835
        %v850 = vadd.f32 %v768, %v831
        %v851 = vadd.f32 %v770, %v835
        %v852 = vadd.f32 %v774, %v831
        %v853 = vadd.f32 %v776, %v835
        %v854 = vadd.f32 %v780, %v831
        %v855 = vadd.f32 %v782, %v835
        %v856 = vadd.f32 %v786, %v831
        %v857 = vadd.f32 %v788, %v835
        %v858 = vadd.f32 %v792, %v831
        %v859 = vadd.f32 %v794, %v835
        %v860 = vadd.f32 %v798, %v831
        %v861 = vadd.f32 %v800, %v835
        %v862 = vadd.f32 %v804, %v831
        %v863 = vadd.f32 %v806, %v835
        %v864 = vadd.f32 %v810, %v831
        %v865 = vadd.f32 %v812, %v835
        %v866 = vadd.f32 %v816, %v831
        %v867 = vadd.f32 %v818, %v835
        %v868 = vadd.f32 %v822, %v831
        %v869 = vadd.f32 %v824, %v835
        %v870 = vmax.f32 %v838, 0.0
        %v871 = vmax.f32 %v839, 0.0
        %v872 = vmax.f32 %v840, 0.0
        %v873 = vmax.f32 %v841, 0.0
        %v874 = vmax.f32 %v842, 0.0
        %v875 = vmax.f32 %v843, 0.0
        %v876 = vmax.f32 %v844, 0.0
        %v877 = vmax.f32 %v845, 0.0
        %v878 = vmax.f32 %v846, 0.0
        %v879 = vmax.f32 %v847, 0.0
        %v880 = vmax.f32 %v848, 0.0
        %v881 = vmax.f32 %v849, 0.0
        %v882 = vmax.f32 %v850, 0.0
        %v883 = vmax.f32 %v851, 0.0
        %v884 = vmax.f32 %v852, 0.0
        %v885 = vmax.f32 %v853, 0.0
        %v886 = vmax.f32 %v854, 0.0
        %v887 = vmax.f32 %v855, 0.0
        %v888 = vmax.f32 %v856, 0.0
        %v889 = vmax.f32 %v857, 0.0
        %v890 = vmax.f32 %v858, 0.0
        %v891 = vmax.f32 %v859, 0.0
        %v892 = vmax.f32 %v860, 0.0
        %v893 = vmax.f32 %v861, 0.0
        %v894 = vmax.f32 %v862, 0.0
        %v895 = vmax.f32 %v863, 0.0
        %v896 = vmax.f32 %v864, 0.0
        %v897 = vmax.f32 %v865, 0.0
        %v898 = vmax.f32 %v866, 0.0
        %v899 = vmax.f32 %v867, 0.0
        %v900 = vmax.f32 %v868, 0.0
        %v901 = vmax.f32 %v869, 0.0
        %v902 = vpack.c.bf16 %v872, %v870
        %v903 = vpack.c.bf16 %v873, %v871
        %v904 = vpack.c.bf16 %v876, %v874
        %v905 = vpack.c.bf16 %v877, %v875
        %v906 = vpack.c.bf16 %v880, %v878
        %v907 = vpack.c.bf16 %v881, %v879
        %v908 = vpack.c.bf16 %v884, %v882
        %v909 = vpack.c.bf16 %v885, %v883
        %v910 = vpack.c.bf16 %v888, %v886
        %v911 = vpack.c.bf16 %v889, %v887
        %v912 = vpack.c.bf16 %v892, %v890
        %v913 = vpack.c.bf16 %v893, %v891
        %v914 = vpack.c.bf16 %v896, %v894
        %v915 = vpack.c.bf16 %v897, %v895
        %v916 = vpack.c.bf16 %v900, %v898
        %v917 = vpack.c.bf16 %v901, %v899
        %v918 = vld [vmem:[%s5] sm:$0xff]
        %v919 = vld [vmem:[%s5 + $0x8] sm:$0xff]
        %v920 = vld [vmem:[%s5 + $0x10] sm:$0xff]
        %v921 = vld [vmem:[%s5 + $0x18] sm:$0xff]
        %v922 = vld [vmem:[%s5 + $0x20] sm:$0xff]
        %v923 = vld [vmem:[%s5 + $0x28] sm:$0xff]
        %v924 = vld [vmem:[%s5 + $0x30] sm:$0xff]
        %v925 = vld [vmem:[%s5 + $0x38] sm:$0xff]
        %v926 = vld [vmem:[%s5 + $0x40] sm:$0xff]
        %v927 = vld [vmem:[%s5 + $0x48] sm:$0xff]
        %v928 = vld [vmem:[%s5 + $0x50] sm:$0xff]
        %v929 = vld [vmem:[%s5 + $0x58] sm:$0xff]
        %v930 = vld [vmem:[%s5 + $0x60] sm:$0xff]
        %v931 = vld [vmem:[%s5 + $0x68] sm:$0xff]
        %v932 = vld [vmem:[%s5 + $0x70] sm:$0xff]
        %v933 = vld [vmem:[%s5 + $0x78] sm:$0xff]
        %v934 = vld [vmem:[%s5 + $0x80] sm:$0xff]
        %v935 = vld [vmem:[%s5 + $0x88] sm:$0xff]
        %v936 = vld [vmem:[%s5 + $0x90] sm:$0xff]
        %v937 = vld [vmem:[%s5 + $0x98] sm:$0xff]
        %v938 = vld [vmem:[%s5 + $0xa0] sm:$0xff]
        %v939 = vld [vmem:[%s5 + $0xa8] sm:$0xff]
        %v940 = vld [vmem:[%s5 + $0xb0] sm:$0xff]
        %v941 = vld [vmem:[%s5 + $0xb8] sm:$0xff]
        %v942 = vld [vmem:[%s5 + $0xc0] sm:$0xff]
        %v943 = vld [vmem:[%s5 + $0xc8] sm:$0xff]
        %v944 = vld [vmem:[%s5 + $0xd0] sm:$0xff]
        %v945 = vld [vmem:[%s5 + $0xd8] sm:$0xff]
        %v946 = vld [vmem:[%s5 + $0xe0] sm:$0xff]
        %v947 = vld [vmem:[%s5 + $0xe8] sm:$0xff]
        %v948 = vld [vmem:[%s5 + $0xf0] sm:$0xff]
        %v949 = vld [vmem:[%s5 + $0xf8] sm:$0xff]
        %v950 = vld [vmem:[%s6] sm:$0x3]
        %v952 = vlaneseq
        %v953 = vshrl.u32 %v952, 7
        %v954 = vsub.s32 0, %v953
        %v955 = vrot.slane %v950, %v954
        %v956 = vlaneseq
        %v957 = vshrl.u32 %v956, 7
        %v958 = vsub.s32 1, %v957
        %v959 = vrot.slane %v950, %v958
        %v994 = vunpack.c.l.b16 %v918
        %v995 = vunpack.c.h.b16 %v918
        %v996 = vunpack.c.l.b16 %v919
        %v997 = vunpack.c.h.b16 %v919
        %v998 = vunpack.c.l.b16 %v920
        %v999 = vunpack.c.h.b16 %v920
        %v1000 = vunpack.c.l.b16 %v921
        %v1001 = vunpack.c.h.b16 %v921
        %v1002 = vunpack.c.l.b16 %v922
        %v1003 = vunpack.c.h.b16 %v922
        %v1004 = vunpack.c.l.b16 %v923
        %v1005 = vunpack.c.h.b16 %v923
        %v1006 = vunpack.c.l.b16 %v924
        %v1007 = vunpack.c.h.b16 %v924
        %v1008 = vunpack.c.l.b16 %v925
        %v1009 = vunpack.c.h.b16 %v925
        %v1010 = vunpack.c.l.b16 %v926
        %v1011 = vunpack.c.h.b16 %v926
        %v1012 = vunpack.c.l.b16 %v927
        %v1013 = vunpack.c.h.b16 %v927
        %v1014 = vunpack.c.l.b16 %v928
        %v1015 = vunpack.c.h.b16 %v928
        %v1016 = vunpack.c.l.b16 %v929
        %v1017 = vunpack.c.h.b16 %v929
        %v1018 = vunpack.c.l.b16 %v930
        %v1019 = vunpack.c.h.b16 %v930
        %v1020 = vunpack.c.l.b16 %v931
        %v1021 = vunpack.c.h.b16 %v931
        %v1022 = vunpack.c.l.b16 %v932
        %v1023 = vunpack.c.h.b16 %v932
        %v1024 = vunpack.c.l.b16 %v933
        %v1025 = vunpack.c.h.b16 %v933
        %v1026 = vunpack.c.l.b16 %v934
        %v1027 = vunpack.c.h.b16 %v934
        %v1028 = vunpack.c.l.b16 %v935
        %v1029 = vunpack.c.h.b16 %v935
        %v1030 = vunpack.c.l.b16 %v936
        %v1031 = vunpack.c.h.b16 %v936
        %v1032 = vunpack.c.l.b16 %v937
        %v1033 = vunpack.c.h.b16 %v937
        %v1034 = vunpack.c.l.b16 %v938
        %v1035 = vunpack.c.h.b16 %v938
        %v1036 = vunpack.c.l.b16 %v939
        %v1037 = vunpack.c.h.b16 %v939
        %v1038 = vunpack.c.l.b16 %v940
        %v1039 = vunpack.c.h.b16 %v940
        %v1040 = vunpack.c.l.b16 %v941
        %v1041 = vunpack.c.h.b16 %v941
        %v1042 = vunpack.c.l.b16 %v942
        %v1043 = vunpack.c.h.b16 %v942
        %v1044 = vunpack.c.l.b16 %v943
        %v1045 = vunpack.c.h.b16 %v943
        %v1046 = vunpack.c.l.b16 %v944
        %v1047 = vunpack.c.h.b16 %v944
        %v1048 = vunpack.c.l.b16 %v945
        %v1049 = vunpack.c.h.b16 %v945
        %v1050 = vunpack.c.l.b16 %v946
        %v1051 = vunpack.c.h.b16 %v946
        %v1052 = vunpack.c.l.b16 %v947
        %v1053 = vunpack.c.h.b16 %v947
        %v1054 = vunpack.c.l.b16 %v948
        %v1055 = vunpack.c.h.b16 %v948
        %v1056 = vunpack.c.l.b16 %v949
        %v1057 = vunpack.c.h.b16 %v949
        %v1058 = vpack.c.b16 %v996, %v994
        %v1059 = vpack.c.b16 %v997, %v995
        %v1060 = vpack.c.b16 %v1000, %v998
        %v1061 = vpack.c.b16 %v1001, %v999
        %v1062 = vpack.c.b16 %v1004, %v1002
        %v1063 = vpack.c.b16 %v1005, %v1003
        %v1064 = vpack.c.b16 %v1008, %v1006
        %v1065 = vpack.c.b16 %v1009, %v1007
        %v1066 = vpack.c.b16 %v1012, %v1010
        %v1067 = vpack.c.b16 %v1013, %v1011
        %v1068 = vpack.c.b16 %v1016, %v1014
        %v1069 = vpack.c.b16 %v1017, %v1015
        %v1070 = vpack.c.b16 %v1020, %v1018
        %v1071 = vpack.c.b16 %v1021, %v1019
        %v1072 = vpack.c.b16 %v1024, %v1022
        %v1073 = vpack.c.b16 %v1025, %v1023
        %v1074 = vpack.c.b16 %v1028, %v1026
        %v1075 = vpack.c.b16 %v1029, %v1027
        %v1076 = vpack.c.b16 %v1032, %v1030
        %v1077 = vpack.c.b16 %v1033, %v1031
        %v1078 = vpack.c.b16 %v1036, %v1034
        %v1079 = vpack.c.b16 %v1037, %v1035
        %v1080 = vpack.c.b16 %v1040, %v1038
        %v1081 = vpack.c.b16 %v1041, %v1039
        %v1082 = vpack.c.b16 %v1044, %v1042
        %v1083 = vpack.c.b16 %v1045, %v1043
        %v1084 = vpack.c.b16 %v1048, %v1046
        %v1085 = vpack.c.b16 %v1049, %v1047
        %v1086 = vpack.c.b16 %v1052, %v1050
        %v1087 = vpack.c.b16 %v1053, %v1051
        %v1088 = vpack.c.b16 %v1056, %v1054
        %v1089 = vpack.c.b16 %v1057, %v1055
        %1122 = vmatprep.subr.bf16.mxu0 %v1059
        %1123 = vmatpush1.bf16.msra.mxu0 %v1058
        %1124 = vmatprep.subr.bf16.mxu0 %v1061
        %1125 = vmatpush1.bf16.msra.mxu0 %v1060
        %1126 = vmatprep.subr.bf16.mxu0 %v1063
        %1127 = vmatpush1.bf16.msra.mxu0 %v1062
        %1128 = vmatprep.subr.bf16.mxu0 %v1065
        %1129 = vmatpush1.bf16.msra.mxu0 %v1064
        %1130 = vmatprep.subr.bf16.mxu0 %v1067
        %1131 = vmatpush1.bf16.msra.mxu0 %v1066
        %1132 = vmatprep.subr.bf16.mxu0 %v1069
        %1133 = vmatpush1.bf16.msra.mxu0 %v1068
        %1134 = vmatprep.subr.bf16.mxu0 %v1071
        %1135 = vmatpush1.bf16.msra.mxu0 %v1070
        %1136 = vmatprep.subr.bf16.mxu0 %v1073
        %1137 = vmatpush1.bf16.msra.mxu0 %v1072
        %1138 = vmatprep.subr.bf16.mxu0 %v1075
        %1139 = vmatpush1.bf16.msra.mxu0 %v1074
        %1140 = vmatprep.subr.bf16.mxu0 %v1077
        %1141 = vmatpush1.bf16.msra.mxu0 %v1076
        %1142 = vmatprep.subr.bf16.mxu0 %v1079
        %1143 = vmatpush1.bf16.msra.mxu0 %v1078
        %1144 = vmatprep.subr.bf16.mxu0 %v1081
        %1145 = vmatpush1.bf16.msra.mxu0 %v1080
        %1146 = vmatprep.subr.bf16.mxu0 %v1083
        %1147 = vmatpush1.bf16.msra.mxu0 %v1082
        %1148 = vmatprep.subr.bf16.mxu0 %v1085
        %1149 = vmatpush1.bf16.msra.mxu0 %v1084
        %1150 = vmatprep.subr.bf16.mxu0 %v1087
        %1151 = vmatpush1.bf16.msra.mxu0 %v1086
        %1152 = vmatprep.subr.bf16.mxu0 %v1089
        %1153 = vmatpush1.bf16.msra.mxu0 %v1088
        %1154 = vmatprep.mubr.bf16.mxu0 %v903
        %1155 = vmatmul.mubr.bf16.gmra.mrb[0].mxu0 %v902
        %v1156 = vpop.f32.mrb[0].mxu0
        %v1157 = vadd.f32 %v955, %v1156
        %v1158 = vpop.f32.mrb[0].mxu0
        %v1159 = vadd.f32 %v959, %v1158
        %v1160 = vpop.f32.mrb[0].mxu0
        %v1161 = vadd.f32 %v955, %v1160
        %v1162 = vpop.f32.mrb[0].mxu0
        %v1163 = vadd.f32 %v959, %v1162
        %1164 = vmatprep.mubr.bf16.mxu0 %v905
        %1165 = vmatmul.mubr.bf16.gmra.mrb[0].mxu0 %v904
        %v1166 = vpop.f32.mrb[0].mxu0
        %v1167 = vadd.f32 %v955, %v1166
        %v1168 = vpop.f32.mrb[0].mxu0
        %v1169 = vadd.f32 %v959, %v1168
        %v1170 = vpop.f32.mrb[0].mxu0
        %v1171 = vadd.f32 %v955, %v1170
        %v1172 = vpop.f32.mrb[0].mxu0
        %v1173 = vadd.f32 %v959, %v1172
        %1174 = vmatprep.mubr.bf16.mxu0 %v907
        %1175 = vmatmul.mubr.bf16.gmra.mrb[0].mxu0 %v906
        %v1176 = vpop.f32.mrb[0].mxu0
        %v1177 = vadd.f32 %v955, %v1176
        %v1178 = vpop.f32.mrb[0].mxu0
        %v1179 = vadd.f32 %v959, %v1178
        %v1180 = vpop.f32.mrb[0].mxu0
        %v1181 = vadd.f32 %v955, %v1180
        %v1182 = vpop.f32.mrb[0].mxu0
        %v1183 = vadd.f32 %v959, %v1182
        %1184 = vmatprep.mubr.bf16.mxu0 %v909
        %1185 = vmatmul.mubr.bf16.gmra.mrb[0].mxu0 %v908
        %v1186 = vpop.f32.mrb[0].mxu0
        %v1187 = vadd.f32 %v955, %v1186
        %v1188 = vpop.f32.mrb[0].mxu0
        %v1189 = vadd.f32 %v959, %v1188
        %v1190 = vpop.f32.mrb[0].mxu0
        %v1191 = vadd.f32 %v955, %v1190
        %v1192 = vpop.f32.mrb[0].mxu0
        %v1193 = vadd.f32 %v959, %v1192
        %1194 = vmatprep.mubr.bf16.mxu0 %v911
        %1195 = vmatmul.mubr.bf16.gmra.mrb[0].mxu0 %v910
        %v1196 = vpop.f32.mrb[0].mxu0
        %v1197 = vadd.f32 %v955, %v1196
        %v1198 = vpop.f32.mrb[0].mxu0
        %v1199 = vadd.f32 %v959, %v1198
        %v1200 = vpop.f32.mrb[0].mxu0
        %v1201 = vadd.f32 %v955, %v1200
        %v1202 = vpop.f32.mrb[0].mxu0
        %v1203 = vadd.f32 %v959, %v1202
        %1204 = vmatprep.mubr.bf16.mxu0 %v913
        %1205 = vmatmul.mubr.bf16.gmra.mrb[0].mxu0 %v912
        %v1206 = vpop.f32.mrb[0].mxu0
        %v1207 = vadd.f32 %v955, %v1206
        %v1208 = vpop.f32.mrb[0].mxu0
        %v1209 = vadd.f32 %v959, %v1208
        %v1210 = vpop.f32.mrb[0].mxu0
        %v1211 = vadd.f32 %v955, %v1210
        %v1212 = vpop.f32.mrb[0].mxu0
        %v1213 = vadd.f32 %v959, %v1212
        %1214 = vmatprep.mubr.bf16.mxu0 %v915
        %1215 = vmatmul.mubr.bf16.gmra.mrb[0].mxu0 %v914
        %v1216 = vpop.f32.mrb[0].mxu0
        %v1217 = vadd.f32 %v955, %v1216
        %v1218 = vpop.f32.mrb[0].mxu0
        %v1219 = vadd.f32 %v959, %v1218
        %v1220 = vpop.f32.mrb[0].mxu0
        %v1221 = vadd.f32 %v955, %v1220
        %v1222 = vpop.f32.mrb[0].mxu0
        %v1223 = vadd.f32 %v959, %v1222
        %1224 = vmatprep.mubr.bf16.mxu0 %v917
        %1225 = vmatmul.mubr.bf16.gmra.mrb[0].mxu0 %v916
        %v1226 = vpop.f32.mrb[0].mxu0
        %v1227 = vadd.f32 %v955, %v1226
        %v1228 = vpop.f32.mrb[0].mxu0
        %v1229 = vadd.f32 %v959, %v1228
        %v1230 = vpop.f32.mrb[0].mxu0
        %v1231 = vadd.f32 %v955, %v1230
        %v1232 = vpop.f32.mrb[0].mxu0
        %v1233 = vadd.f32 %v959, %v1232
        %1234 = vdwg.mxu0
        %v1235 = vmax.f32 %v1157, 0.0
        %v1236 = vmax.f32 %v1159, 0.0
        %v1237 = vmax.f32 %v1161, 0.0
        %v1238 = vmax.f32 %v1163, 0.0
        %v1239 = vmax.f32 %v1167, 0.0
        %v1240 = vmax.f32 %v1169, 0.0
        %v1241 = vmax.f32 %v1171, 0.0
        %v1242 = vmax.f32 %v1173, 0.0
        %v1243 = vmax.f32 %v1177, 0.0
        %v1244 = vmax.f32 %v1179, 0.0
        %v1245 = vmax.f32 %v1181, 0.0
        %v1246 = vmax.f32 %v1183, 0.0
        %v1247 = vmax.f32 %v1187, 0.0
        %v1248 = vmax.f32 %v1189, 0.0
        %v1249 = vmax.f32 %v1191, 0.0
        %v1250 = vmax.f32 %v1193, 0.0
        %v1251 = vmax.f32 %v1197, 0.0
        %v1252 = vmax.f32 %v1199, 0.0
        %v1253 = vmax.f32 %v1201, 0.0
        %v1254 = vmax.f32 %v1203, 0.0
        %v1255 = vmax.f32 %v1207, 0.0
        %v1256 = vmax.f32 %v1209, 0.0
        %v1257 = vmax.f32 %v1211, 0.0
        %v1258 = vmax.f32 %v1213, 0.0
        %v1259 = vmax.f32 %v1217, 0.0
        %v1260 = vmax.f32 %v1219, 0.0
        %v1261 = vmax.f32 %v1221, 0.0
        %v1262 = vmax.f32 %v1223, 0.0
        %v1263 = vmax.f32 %v1227, 0.0
        %v1264 = vmax.f32 %v1229, 0.0
        %v1265 = vmax.f32 %v1231, 0.0
        %v1266 = vmax.f32 %v1233, 0.0
        %v1267 = vld [vmem:[%s7] sm:$0xff]
        %v1268 = vld [vmem:[%s7 + $0x8] sm:$0xff]
        %1269 = vmatprep.subr.mxu0 %v1236
        %1270 = vmatpush1.xpose.msra.mxu0 %v1235
        %1271 = vmatprep.subr.mxu0 %v1238
        %1272 = vmatpush1.xpose.msra.mxu0 %v1237
        %1273 = vmatprep.subr.mxu0 %v1240
        %1274 = vmatpush1.xpose.msra.mxu0 %v1239
        %1275 = vmatprep.subr.mxu0 %v1242
        %1276 = vmatpush1.xpose.msra.mxu0 %v1241
        %1277 = vmatprep.subr.mxu0 %v1244
        %1278 = vmatpush1.xpose.msra.mxu0 %v1243
        %1279 = vmatprep.subr.mxu0 %v1246
        %1280 = vmatpush1.xpose.msra.mxu0 %v1245
        %1281 = vmatprep.subr.mxu0 %v1248
        %1282 = vmatpush1.xpose.msra.mxu0 %v1247
        %1283 = vmatprep.subr.mxu0 %v1250
        %1284 = vmatpush1.xpose.msra.mxu0 %v1249
        %1285 = vmatprep.subr.mxu0 %v1252
        %1286 = vmatpush1.xpose.msra.mxu0 %v1251
        %1287 = vmatprep.subr.mxu0 %v1254
        %1288 = vmatpush1.xpose.msra.mxu0 %v1253
        %1289 = vmatprep.subr.mxu0 %v1256
        %1290 = vmatpush1.xpose.msra.mxu0 %v1255
        %1291 = vmatprep.subr.mxu0 %v1258
        %1292 = vmatpush1.xpose.msra.mxu0 %v1257
        %1293 = vmatprep.subr.mxu0 %v1260
        %1294 = vmatpush1.xpose.msra.mxu0 %v1259
        %1295 = vmatprep.subr.mxu0 %v1262
        %1296 = vmatpush1.xpose.msra.mxu0 %v1261
        %1297 = vmatprep.subr.mxu0 %v1264
        %1298 = vmatpush1.xpose.msra.mxu0 %v1263
        %1299 = vmatprep.subr.mxu0 %v1266
        %1300 = vmatpush1.xpose.msra.mxu0 %v1265
        %1301 = vmatprep.subr.mxu0 0.0
        %1302 = vmatpush1.xpose.msra.mxu0 0.0
        %1303 = vmatprep.subr.mxu0 0.0
        %1304 = vmatpush1.xpose.msra.mxu0 0.0
        %1305 = vmatprep.subr.mxu0 0.0
        %1306 = vmatpush1.xpose.msra.mxu0 0.0
        %1307 = vmatprep.subr.mxu0 0.0
        %1308 = vmatpush1.xpose.msra.mxu0 0.0
        %1309 = vmatprep.subr.mxu0 0.0
        %1310 = vmatpush1.xpose.msra.mxu0 0.0
        %1311 = vmatprep.subr.mxu0 0.0
        %1312 = vmatpush1.xpose.msra.mxu0 0.0
        %1313 = vmatprep.subr.mxu0 0.0
        %1314 = vmatpush1.xpose.msra.mxu0 0.0
        %1315 = vmatprep.subr.mxu0 0.0
        %1316 = vmatpush1.xpose.msra.mxu0 0.0
        %1317 = vmatprep.subr.mxu0 0.0
        %1318 = vmatpush1.xpose.msra.mxu0 0.0
        %1319 = vmatprep.subr.mxu0 0.0
        %1320 = vmatpush1.xpose.msra.mxu0 0.0
        %1321 = vmatprep.subr.mxu0 0.0
        %1322 = vmatpush1.xpose.msra.mxu0 0.0
        %1323 = vmatprep.subr.mxu0 0.0
        %1324 = vmatpush1.xpose.msra.mxu0 0.0
        %1325 = vmatprep.subr.mxu0 0.0
        %1326 = vmatpush1.xpose.msra.mxu0 0.0
        %1327 = vmatprep.subr.mxu0 0.0
        %1328 = vmatpush1.xpose.msra.mxu0 0.0
        %1329 = vmatprep.subr.mxu0 0.0
        %1330 = vmatpush1.xpose.msra.mxu0 0.0
        %1331 = vmatprep.subr.mxu0 0.0
        %1332 = vmatpush1.xpose.msra.mxu0 0.0
        %1333 = vmatprep.mubr.f32.mxu0 %v1268
        %1334 = vmatmul.mubr.f32.gmra.mrb[0].mxu0 %v1267
        %v1335 = vpop.f32.mrb[0].mxu0
        %v1336 = vadd.f32 0.0, %v1335
        %v1337 = vpop.f32.mrb[0].mxu0
        %1338 = vdwg.mxu0
        %v1339 = vld [vmem:[#allocation2] sm:$0x1]
        %1341 = vset.pattern.permute.xlu0 0
        %1342 = vperm.xlu0 %1341, %v1339
        %v1343 = vpop.permute.xlu0 %1342
        %v1345 = vlaneseq
        %v1346 = vshrl.u32 %v1345, 7
        %v1347 = vsub.s32 0, %v1346
        %v1348 = vrot.slane %v1343, %v1347
        %v1349 = vadd.f32 %v1336, %v1348
        %1350 = vst [vmem:[%s343] sm:$0x1] %v1349
        %s1351 = sand.u32 %s232, 1
        %s1352 = scalar_lea.sflag [#allocation4], %s1351
        %s1353 = sand.u32 %s232, 1
        %s1354 = scalar_lea.vmem [#allocation3], %s1353
        // Predicated region
        $region57: #{state_action_function_forward.1} parent=55 // pred_check
          %p1355 = pneg %p242
        $region58: #{state_action_function_forward.1} parent=55 // pred_check_branch
          %1357 = sbr.rel (%p1355) target = $region60
        $region59: #{state_action_function_forward.1} parent=55 // pred_region
          %s1359 = ssub.s32 16, 16
          %1360 = vsyncadd %s1352, %s1359
          %s1361 = smul.addr %s25, 16
          %s1362 = scalar_lea.hbm %s9, %s1361
          %s1364 = sshll.u32 %s1354, 4
          %s1365 = int_to_ptr.vmem [resolvable:$true] %s1364
          %1367 = dma.vmem_to_hbm [thread:$0]  %s1365, 16, %s1362, %s1352
        $region60: #{state_action_function_forward.1} parent=55 // pred_fallthru
          _
      $region56: #{state_action_function_forward.1} parent=5 // pred_fallthru
        _
      %p1368 = scmp.le.s32.totalorder 2, %s20
      // Predicated region
      $region61: #{state_action_function_forward.1} parent=5 // pred_check
        %p1369 = pneg %p1368
      $region62: #{state_action_function_forward.1} parent=5 // pred_check_branch
        %1371 = sbr.rel (%p1369) target = $region64
      $region63: #{state_action_function_forward.1} parent=5 // pred_region
        %s1372 = ssub.s32 %s20, 2
        // Predicated region
        $region65: #{state_action_function_forward.1} parent=63 // pred_check
          %p1373 = pneg %p248
        $region66: #{state_action_function_forward.1} parent=63 // pred_check_branch
          %1375 = sbr.rel (%p1373) target = $region68
        $region67: #{state_action_function_forward.1} parent=63 // pred_region
          %s1376 = sand.u32 %s233, 1
          %s1377 = scalar_lea.sflag [#allocation4], %s1376
          %s1378 = sand.u32 %s233, 1
          %s1379 = scalar_lea.vmem [#allocation3], %s1378
          %1380 = dma.done %s1377, 16
        $region68: #{state_action_function_forward.1} parent=63 // pred_fallthru
          _
      $region64: #{state_action_function_forward.1} parent=5 // pred_fallthru
        _
    $region6: #{state_action_function_forward.1} parent=1 // loop_footer
      %s24 = sadd.s32 1, %s20
    $region7: #{state_action_function_forward.1} parent=1 // loop_footer_branch
      %19 = sbr.rel target = $region3
    $region8: #{state_action_function_forward.1} parent=1 // loop_exit
      _
    %1381 = vsyncpa [#allocation4], 1
    %s1382 = scalar_lea.sflag [#allocation4], 1
    %1383 = vsyncpa %s1382, 1

</llo_original>
